<compile_context>
chip_gen: v5e
topology: v5e:2x2
jax: 0.10.0
libtpu: 0.0.40
codegen_flags: <defaults>
</compile_context>

<pallas_src>
import functools

import jax
import jax.numpy as jnp
from jax import lax
from jax.experimental import pallas as pl
from jax.experimental.pallas import tpu as pltpu


def _round_up(x, m):
    return (x + m - 1) // m * m


def _nce_lse_kernel(zi_q_ref, zj_q_ref, zi_k_ref, zj_k_ref, o_ref,
                    m_i, l_i, m_j, l_j, *, big, b_valid, need_col_mask):
    r = pl.program_id(0)          # row-tile index (parallel)
    c = pl.program_id(1)          # col-tile index (reduction, innermost)
    n_col = pl.num_programs(1)

    @pl.when(c == 0)
    def _init():
        m_i[...] = jnp.full_like(m_i, -jnp.inf)
        m_j[...] = jnp.full_like(m_j, -jnp.inf)
        l_i[...] = jnp.zeros_like(l_i)
        l_j[...] = jnp.zeros_like(l_j)

    # Pre-normalized (and 1/sqrt(t)-scaled) bf16 embeddings -- no per-step
    # normalization work in the kernel.
    qi = zi_q_ref[...]            # (TQ, D) row tile, first half
    qj = zj_q_ref[...]            # (TQ, D) row tile, second half
    ki = zi_k_ref[...]            # (TK, D) col tile, first half
    kj = zj_k_ref[...]            # (TK, D) col tile, second half

    tq = qi.shape[0]
    tk = ki.shape[0]

    # Fused self-similarity (-1e12/t on the diagonal) + padded-column penalty,
    # built once per grid step with global row/col indices (handles TQ != TK).
    row_g = r * tq + lax.broadcasted_iota(jnp.int32, (tq, tk), 0)
    col_g = c * tk + lax.broadcasted_iota(jnp.int32, (tq, tk), 1)
    diag = row_g == col_g
    bigf = jnp.float32(big)
    zero = jnp.float32(0.0)
    if need_col_mask:
        pad = col_g >= b_valid
        pen_same = jnp.where(jnp.logical_or(diag, pad), bigf, zero)   # s_ii, s_jj
        pen_cross = jnp.where(pad, bigf, zero)                        # s_ij, s_ji
    else:
        pen_same = jnp.where(diag, bigf, zero)
        pen_cross = None

    dn = (((1,), (1,)), ((), ()))  # contract last dim of both -> no transpose

    def _update(m_ref, l_ref, sa, sb):
        # Online logsumexp over the column tiles (f32 throughout).
        m_prev = m_ref[...]
        m_new = jnp.maximum(m_prev,
                            jnp.maximum(jnp.max(sa, axis=-1, keepdims=True),
                                        jnp.max(sb, axis=-1, keepdims=True)))
        alpha = jnp.exp(m_prev - m_new)
        p = (jnp.sum(jnp.exp(sa - m_new), axis=-1, keepdims=True)
             + jnp.sum(jnp.exp(sb - m_new), axis=-1, keepdims=True))
        l_ref[...] = alpha * l_ref[...] + p
        m_ref[...] = m_new

    # First-half rows: keys [K_i | K_j].  Compute + consume before touching
    # the second half so only two (TQ, TK) f32 tiles are live at a time.
    s_ii = lax.dot_general(qi, ki, dn, preferred_element_type=jnp.float32) - pen_same
    s_ij = lax.dot_general(qi, kj, dn, preferred_element_type=jnp.float32)
    if pen_cross is not None:
        s_ij = s_ij - pen_cross
    _update(m_i, l_i, s_ii, s_ij)

    # Second-half rows: keys [K_i | K_j].
    s_ji = lax.dot_general(qj, ki, dn, preferred_element_type=jnp.float32)
    if pen_cross is not None:
        s_ji = s_ji - pen_cross
    s_jj = lax.dot_general(qj, kj, dn, preferred_element_type=jnp.float32) - pen_same
    _update(m_j, l_j, s_ji, s_jj)

    @pl.when(c == n_col - 1)
    def _finalize():
        o_ref[:, 0:1] = m_i[...] + jnp.log(l_i[...])   # first-half rows' LSE
        o_ref[:, 1:2] = m_j[...] + jnp.log(l_j[...])   # second-half rows' LSE


def nce_softmax_loss(z_i: jax.Array, z_j: jax.Array, t: float = 0.08,
                     block_q: int = 128, block_k: int = 256) -> jax.Array:
    """NT-Xent loss. block_k=256 fills the v6e/v7x MXU; use 128 on v5e."""
    assert z_i.shape == z_j.shape and z_i.ndim == 2
    b, d = z_i.shape
    inv_t = 1.0 / float(t)

    # ---- one-shot normalization / scaling in the wrapper (cheap XLA pass) ---
    def _norm(x):
        x = x.astype(jnp.float32)
        ss = jnp.sum(x * x, axis=-1, keepdims=True)
        return x * lax.rsqrt(jnp.maximum(ss, jnp.float32(1e-24)))  # eps=1e-12 norm

    ei = _norm(z_i)
    ej = _norm(z_j)

    # Positive-pair logit (accuracy-critical) stays in f32 outside the kernel;
    # identical for row i and row B+i.
    pos = jnp.sum(ei * ej, axis=-1) * jnp.float32(inv_t)            # (b,)

    scale = jnp.float32(inv_t ** 0.5)                               # fold 1/sqrt(t)
    ei_b = (ei * scale).astype(jnp.bfloat16)
    ej_b = (ej * scale).astype(jnp.bfloat16)

    # ---- tiling / padding ----------------------------------------------------
    tile_q = _round_up(min(block_q, _round_up(b, 8)), 8)
    tile_k = max(tile_q,
                 (min(block_k, _round_up(b, tile_q)) // tile_q) * tile_q)
    b_pad = _round_up(b, max(tile_q, tile_k))          # divisible by both tiles
    d_pad = _round_up(d, 128)

    if b_pad != b or d_pad != d:
        # Zero padding: padded feature columns add nothing to the dots; padded
        # key rows are masked in-kernel; padded query rows are dropped below.
        ei_p = jnp.pad(ei_b, ((0, b_pad - b), (0, d_pad - d)))
        ej_p = jnp.pad(ej_b, ((0, b_pad - b), (0, d_pad - d)))
    else:
        ei_p, ej_p = ei_b, ej_b

    n_q = b_pad // tile_q
    n_k = b_pad // tile_k

    kernel = functools.partial(
        _nce_lse_kernel,
        big=1.0e12 * inv_t,           # diagonal penalty already divided by t
        b_valid=b,
        need_col_mask=(b_pad != b),
    )

    cost = pl.CostEstimate(
        flops=2 * (2 * b_pad) * (2 * b_pad) * d_pad,
        transcendentals=4 * n_q * n_k * tile_q * tile_k,
        bytes_accessed=(2 * b_pad * d_pad * 2              # row tiles (revisited)
                        + 2 * n_q * b_pad * d_pad * 2      # key stream per row tile
                        + b_pad * 2 * 4),                  # output
    )

    # VMEM audit: 4 in-specs x 2 buffers, bf16 tiles (dominant consumer).
    vmem_need = 2 * 2 * (tile_q + tile_k) * d_pad * 2
    vmem_need += 2 * tile_q * 2 * 4 + 4 * tile_q * 4       # output bufs + scratch
    cp_kwargs = {"dimension_semantics": ("parallel", "arbitrary")}
    if vmem_need > (12 << 20):
        # Large-D configs: raise the scoped-VMEM limit explicitly (defaults:
        # 16 MiB v5e, 32 MiB v6e/v7x) while staying inside v7x's 64 MiB.
        cp_kwargs["vmem_limit_bytes"] = int(min(2 * vmem_need, 64 << 20))

    out = pl.pallas_call(
        kernel,
        out_shape=jax.ShapeDtypeStruct((b_pad, 2), jnp.float32),
        grid_spec=pltpu.PrefetchScalarGridSpec(
            num_scalar_prefetch=0,
            grid=(n_q, n_k),              # (row tiles, col tiles = reduction)
            in_specs=[
                pl.BlockSpec((tile_q, d_pad), lambda r, c: (r, 0)),  # z_i rows
                pl.BlockSpec((tile_q, d_pad), lambda r, c: (r, 0)),  # z_j rows
                pl.BlockSpec((tile_k, d_pad), lambda r, c: (c, 0)),  # z_i cols
                pl.BlockSpec((tile_k, d_pad), lambda r, c: (c, 0)),  # z_j cols
            ],
            out_specs=pl.BlockSpec((tile_q, 2), lambda r, c: (r, 0)),
            scratch_shapes=[pltpu.VMEM((tile_q, 1), jnp.float32)] * 4,
        ),
        compiler_params=pltpu.CompilerParams(**cp_kwargs),
        cost_estimate=cost,
    )(ei_p, ej_p, ei_p, ej_p)

    # out[:, 0] = LSE of first-half rows, out[:, 1] = LSE of second-half rows.
    # CrossEntropyLoss mean over the 2B rows.
    return jnp.mean(out[:b, :] - pos[:, None])


if __name__ == "__main__":
    key = jax.random.PRNGKey(0)
    k1, k2, k3, k4, k5, k6 = jax.random.split(key, 6)

    def reference(z_i, z_j, t=0.08):
        b = z_i.shape[0]
        z = jnp.concatenate([z_i, z_j], axis=0)
        emb = z / jnp.maximum(jnp.linalg.norm(z, axis=1, keepdims=True), 1e-12)
        sim = (emb @ emb.T - jnp.eye(2 * b) * 1.0e12) / t
        labels = (jnp.arange(2 * b) + b) % (2 * b)
        lse = jax.scipy.special.logsumexp(sim, axis=-1)
        return jnp.mean(lse - sim[jnp.arange(2 * b), labels])

    # 1) Small case consistent with the module: batch=8, hidden=32.
    B, D = 8, 32
    z_i = jax.random.normal(k1, (B, D), dtype=jnp.float32)
    z_j = jax.random.normal(k2, (B, D), dtype=jnp.float32)
    loss = jax.jit(nce_softmax_loss)(z_i, z_j)
    jax.block_until_ready(loss)
    ref = reference(z_i, z_j)
    assert jnp.allclose(loss, ref, rtol=1e-2, atol=5e-2), (loss, ref)

    # 2) Non-tile-aligned case with forced small tiles: exercises the multi-
    #    step online LSE, diagonal-tile masking and padded-column masking.
    B2, D2 = 200, 96
    z_i2 = jax.random.normal(k3, (B2, D2), dtype=jnp.float32)
    z_j2 = jax.random.normal(k4, (B2, D2), dtype=jnp.float32)
    f2 = jax.jit(functools.partial(nce_softmax_loss, block_q=64, block_k=64))
    loss2 = f2(z_i2, z_j2)
    jax.block_until_ready(loss2)
    ref2 = reference(z_i2, z_j2)
    assert jnp.allclose(loss2, ref2, rtol=1e-2, atol=5e-2), (loss2, ref2)

    # 3) Unequal row/col tiles (TQ=128, TK=256) with the diagonal crossing
    #    tile boundaries plus row/column padding.
    B3, D3 = 300, 64
    z_i3 = jax.random.normal(k5, (B3, D3), dtype=jnp.float32)
    z_j3 = jax.random.normal(k6, (B3, D3), dtype=jnp.float32)
    loss3 = jax.jit(nce_softmax_loss)(z_i3, z_j3)
    jax.block_until_ready(loss3)
    ref3 = reference(z_i3, z_j3)
    assert jnp.allclose(loss3, ref3, rtol=1e-2, atol=5e-2), (loss3, ref3)

    print("KERNEL_OK")
</pallas_src>

<mosaic_0001>
module attributes {stable_mosaic.version = 11 : i64} {
  func.func @_nce_lse_kernel(%arg0: i32, %arg1: i32, %arg2: memref<8x128xbf16, #tpu.memory_space<vmem>>, %arg3: memref<8x128xbf16, #tpu.memory_space<vmem>>, %arg4: memref<8x128xbf16, #tpu.memory_space<vmem>>, %arg5: memref<8x128xbf16, #tpu.memory_space<vmem>>, %arg6: memref<8x2xf32, #tpu.memory_space<vmem>>, %arg7: memref<8x1xf32, #tpu.memory_space<vmem>>, %arg8: memref<8x1xf32, #tpu.memory_space<vmem>>, %arg9: memref<8x1xf32, #tpu.memory_space<vmem>>, %arg10: memref<8x1xf32, #tpu.memory_space<vmem>>) attributes {dimension_semantics = [#tpu.dimension_semantics<parallel>, #tpu.dimension_semantics<arbitrary>], iteration_bounds = array<i64: 1, 1>, scalar_prefetch = 0 : i64, scratch_operands = 4 : i64, tpu.core_type = #tpu.core_type<tc>, window_params = [{transform_indices = @transform_0, window_bounds = array<i64: 8, 128>}, {transform_indices = @transform_1, window_bounds = array<i64: 8, 128>}, {transform_indices = @transform_2, window_bounds = array<i64: 8, 128>}, {transform_indices = @transform_3, window_bounds = array<i64: 8, 128>}, {transform_indices = @transform_4, window_bounds = array<i64: 8, 2>}]} {
    %c0_i32 = arith.constant 0 : i32
    %0 = arith.cmpi eq, %arg1, %c0_i32 : i32
    %1 = arith.extui %0 : i1 to i32
    %c0_i32_0 = arith.constant 0 : i32
    %2 = arith.cmpi ne, %1, %c0_i32_0 : i32
    scf.if %2 {
      %cst_40 = arith.constant 0xFF800000 : f32
      %78 = vector.broadcast %cst_40 : f32 to vector<8x1xf32>
      %c0_41 = arith.constant 0 : index
      %c0_42 = arith.constant 0 : index
      %79 = vector.load %arg7[%c0_41, %c0_42] : memref<8x1xf32, #tpu.memory_space<vmem>>, vector<8x1xf32>
      tpu.vector_store %arg7[%c0_41, %c0_42], %78 {strides = array<i32>} : memref<8x1xf32, #tpu.memory_space<vmem>>, vector<8x1xf32>,
      %cst_43 = arith.constant 0xFF800000 : f32
      %80 = vector.broadcast %cst_43 : f32 to vector<8x1xf32>
      %c0_44 = arith.constant 0 : index
      %c0_45 = arith.constant 0 : index
      %81 = vector.load %arg9[%c0_44, %c0_45] : memref<8x1xf32, #tpu.memory_space<vmem>>, vector<8x1xf32>
      tpu.vector_store %arg9[%c0_44, %c0_45], %80 {strides = array<i32>} : memref<8x1xf32, #tpu.memory_space<vmem>>, vector<8x1xf32>,
      %cst_46 = arith.constant 0.000000e+00 : f32
      %82 = vector.broadcast %cst_46 : f32 to vector<8x1xf32>
      %c0_47 = arith.constant 0 : index
      %c0_48 = arith.constant 0 : index
      %83 = vector.load %arg8[%c0_47, %c0_48] : memref<8x1xf32, #tpu.memory_space<vmem>>, vector<8x1xf32>
      tpu.vector_store %arg8[%c0_47, %c0_48], %82 {strides = array<i32>} : memref<8x1xf32, #tpu.memory_space<vmem>>, vector<8x1xf32>,
      %cst_49 = arith.constant 0.000000e+00 : f32
      %84 = vector.broadcast %cst_49 : f32 to vector<8x1xf32>
      %c0_50 = arith.constant 0 : index
      %c0_51 = arith.constant 0 : index
      %85 = vector.load %arg10[%c0_50, %c0_51] : memref<8x1xf32, #tpu.memory_space<vmem>>, vector<8x1xf32>
      tpu.vector_store %arg10[%c0_50, %c0_51], %84 {strides = array<i32>} : memref<8x1xf32, #tpu.memory_space<vmem>>, vector<8x1xf32>,
    } else {
    }
    %c0 = arith.constant 0 : index
    %c0_1 = arith.constant 0 : index
    %3 = vector.load %arg2[%c0, %c0_1] : memref<8x128xbf16, #tpu.memory_space<vmem>>, vector<8x128xbf16>
    %c0_2 = arith.constant 0 : index
    %c0_3 = arith.constant 0 : index
    %4 = vector.load %arg3[%c0_2, %c0_3] : memref<8x128xbf16, #tpu.memory_space<vmem>>, vector<8x128xbf16>
    %c0_4 = arith.constant 0 : index
    %c0_5 = arith.constant 0 : index
    %5 = vector.load %arg4[%c0_4, %c0_5] : memref<8x128xbf16, #tpu.memory_space<vmem>>, vector<8x128xbf16>
    %c0_6 = arith.constant 0 : index
    %c0_7 = arith.constant 0 : index
    %6 = vector.load %arg5[%c0_6, %c0_7] : memref<8x128xbf16, #tpu.memory_space<vmem>>, vector<8x128xbf16>
    %c8_i32 = arith.constant 8 : i32
    %7 = arith.muli %arg0, %c8_i32 : i32
    %8 = tpu.iota {dimensions = array<i32: 0>} : vector<8x8xi32>
    %9 = vector.broadcast %7 : i32 to vector<8x8xi32>
    %10 = arith.addi %9, %8 : vector<8x8xi32>
    %c8_i32_8 = arith.constant 8 : i32
    %11 = arith.muli %arg1, %c8_i32_8 : i32
    %12 = tpu.iota {dimensions = array<i32: 1>} : vector<8x8xi32>
    %13 = vector.broadcast %11 : i32 to vector<8x8xi32>
    %14 = arith.addi %13, %12 : vector<8x8xi32>
    %15 = arith.cmpi eq, %10, %14 : vector<8x8xi32>
    %cst = arith.constant 1.250000e+13 : f32
    %cst_9 = arith.constant 0.000000e+00 : f32
    %16 = vector.broadcast %cst : f32 to vector<8x8xf32>
    %17 = vector.broadcast %cst_9 : f32 to vector<8x8xf32>
    %18 = arith.select %15, %16, %17 : vector<8x8xi1>, vector<8x8xf32>
    %cst_10 = arith.constant dense<0.000000e+00> : vector<8x8xf32>
    %19 = tpu.matmul %3, %5, %cst_10 {dimension_numbers = #tpu.dot_dimension_numbers<[1], [1], [0], [0], [0, 0, 1, 0], [], []>} : vector<8x128xbf16>, vector<8x128xbf16>, vector<8x8xf32> -> vector<8x8xf32>
    %20 = arith.subf %19, %18 : vector<8x8xf32>
    %cst_11 = arith.constant dense<0.000000e+00> : vector<8x8xf32>
    %21 = tpu.matmul %3, %6, %cst_11 {dimension_numbers = #tpu.dot_dimension_numbers<[1], [1], [0], [0], [0, 0, 1, 0], [], []>} : vector<8x128xbf16>, vector<8x128xbf16>, vector<8x8xf32> -> vector<8x8xf32>
    %c0_12 = arith.constant 0 : index
    %c0_13 = arith.constant 0 : index
    %22 = vector.load %arg7[%c0_12, %c0_13] : memref<8x1xf32, #tpu.memory_space<vmem>>, vector<8x1xf32>
    %cst_14 = arith.constant dense<0xFF800000> : vector<8xf32>
    %23 = vector.multi_reduction <maximumf>, %20, %cst_14 [1] : vector<8x8xf32> to vector<8xf32>
    %24 = vector.shape_cast %23 : vector<8xf32> to vector<8x1xf32>
    %cst_15 = arith.constant dense<0xFF800000> : vector<8xf32>
    %25 = vector.multi_reduction <maximumf>, %21, %cst_15 [1] : vector<8x8xf32> to vector<8xf32>
    %26 = vector.shape_cast %25 : vector<8xf32> to vector<8x1xf32>
    %27 = arith.maximumf %24, %26 : vector<8x1xf32>
    %28 = arith.maximumf %22, %27 : vector<8x1xf32>
    %29 = arith.subf %22, %28 : vector<8x1xf32>
    %30 = math.exp %29 : vector<8x1xf32>
    %31 = vector.broadcast %28 : vector<8x1xf32> to vector<8x8xf32>
    %32 = arith.subf %20, %31 : vector<8x8xf32>
    %33 = math.exp %32 : vector<8x8xf32>
    %cst_16 = arith.constant dense<0.000000e+00> : vector<8xf32>
    %34 = vector.multi_reduction <add>, %33, %cst_16 [1] : vector<8x8xf32> to vector<8xf32>
    %35 = vector.shape_cast %34 : vector<8xf32> to vector<8x1xf32>
    %36 = vector.broadcast %28 : vector<8x1xf32> to vector<8x8xf32>
    %37 = arith.subf %21, %36 : vector<8x8xf32>
    %38 = math.exp %37 : vector<8x8xf32>
    %cst_17 = arith.constant dense<0.000000e+00> : vector<8xf32>
    %39 = vector.multi_reduction <add>, %38, %cst_17 [1] : vector<8x8xf32> to vector<8xf32>
    %40 = vector.shape_cast %39 : vector<8xf32> to vector<8x1xf32>
    %41 = arith.addf %35, %40 : vector<8x1xf32>
    %c0_18 = arith.constant 0 : index
    %c0_19 = arith.constant 0 : index
    %42 = vector.load %arg8[%c0_18, %c0_19] : memref<8x1xf32, #tpu.memory_space<vmem>>, vector<8x1xf32>
    %43 = arith.mulf %30, %42 : vector<8x1xf32>
    %44 = arith.addf %43, %41 : vector<8x1xf32>
    %c0_20 = arith.constant 0 : index
    %c0_21 = arith.constant 0 : index
    %45 = vector.load %arg8[%c0_20, %c0_21] : memref<8x1xf32, #tpu.memory_space<vmem>>, vector<8x1xf32>
    tpu.vector_store %arg8[%c0_20, %c0_21], %44 {strides = array<i32>} : memref<8x1xf32, #tpu.memory_space<vmem>>, vector<8x1xf32>,
    %c0_22 = arith.constant 0 : index
    %c0_23 = arith.constant 0 : index
    %46 = vector.load %arg7[%c0_22, %c0_23] : memref<8x1xf32, #tpu.memory_space<vmem>>, vector<8x1xf32>
    tpu.vector_store %arg7[%c0_22, %c0_23], %28 {strides = array<i32>} : memref<8x1xf32, #tpu.memory_space<vmem>>, vector<8x1xf32>,
    %cst_24 = arith.constant dense<0.000000e+00> : vector<8x8xf32>
    %47 = tpu.matmul %4, %5, %cst_24 {dimension_numbers = #tpu.dot_dimension_numbers<[1], [1], [0], [0], [0, 0, 1, 0], [], []>} : vector<8x128xbf16>, vector<8x128xbf16>, vector<8x8xf32> -> vector<8x8xf32>
    %cst_25 = arith.constant dense<0.000000e+00> : vector<8x8xf32>
    %48 = tpu.matmul %4, %6, %cst_25 {dimension_numbers = #tpu.dot_dimension_numbers<[1], [1], [0], [0], [0, 0, 1, 0], [], []>} : vector<8x128xbf16>, vector<8x128xbf16>, vector<8x8xf32> -> vector<8x8xf32>
    %49 = arith.subf %48, %18 : vector<8x8xf32>
    %c0_26 = arith.constant 0 : index
    %c0_27 = arith.constant 0 : index
    %50 = vector.load %arg9[%c0_26, %c0_27] : memref<8x1xf32, #tpu.memory_space<vmem>>, vector<8x1xf32>
    %cst_28 = arith.constant dense<0xFF800000> : vector<8xf32>
    %51 = vector.multi_reduction <maximumf>, %47, %cst_28 [1] : vector<8x8xf32> to vector<8xf32>
    %52 = vector.shape_cast %51 : vector<8xf32> to vector<8x1xf32>
    %cst_29 = arith.constant dense<0xFF800000> : vector<8xf32>
    %53 = vector.multi_reduction <maximumf>, %49, %cst_29 [1] : vector<8x8xf32> to vector<8xf32>
    %54 = vector.shape_cast %53 : vector<8xf32> to vector<8x1xf32>
    %55 = arith.maximumf %52, %54 : vector<8x1xf32>
    %56 = arith.maximumf %50, %55 : vector<8x1xf32>
    %57 = arith.subf %50, %56 : vector<8x1xf32>
    %58 = math.exp %57 : vector<8x1xf32>
    %59 = vector.broadcast %56 : vector<8x1xf32> to vector<8x8xf32>
    %60 = arith.subf %47, %59 : vector<8x8xf32>
    %61 = math.exp %60 : vector<8x8xf32>
    %cst_30 = arith.constant dense<0.000000e+00> : vector<8xf32>
    %62 = vector.multi_reduction <add>, %61, %cst_30 [1] : vector<8x8xf32> to vector<8xf32>
    %63 = vector.shape_cast %62 : vector<8xf32> to vector<8x1xf32>
    %64 = vector.broadcast %56 : vector<8x1xf32> to vector<8x8xf32>
    %65 = arith.subf %49, %64 : vector<8x8xf32>
    %66 = math.exp %65 : vector<8x8xf32>
    %cst_31 = arith.constant dense<0.000000e+00> : vector<8xf32>
    %67 = vector.multi_reduction <add>, %66, %cst_31 [1] : vector<8x8xf32> to vector<8xf32>
    %68 = vector.shape_cast %67 : vector<8xf32> to vector<8x1xf32>
    %69 = arith.addf %63, %68 : vector<8x1xf32>
    %c0_32 = arith.constant 0 : index
    %c0_33 = arith.constant 0 : index
    %70 = vector.load %arg10[%c0_32, %c0_33] : memref<8x1xf32, #tpu.memory_space<vmem>>, vector<8x1xf32>
    %71 = arith.mulf %58, %70 : vector<8x1xf32>
    %72 = arith.addf %71, %69 : vector<8x1xf32>
    %c0_34 = arith.constant 0 : index
    %c0_35 = arith.constant 0 : index
    %73 = vector.load %arg10[%c0_34, %c0_35] : memref<8x1xf32, #tpu.memory_space<vmem>>, vector<8x1xf32>
    tpu.vector_store %arg10[%c0_34, %c0_35], %72 {strides = array<i32>} : memref<8x1xf32, #tpu.memory_space<vmem>>, vector<8x1xf32>,
    %c0_36 = arith.constant 0 : index
    %c0_37 = arith.constant 0 : index
    %74 = vector.load %arg9[%c0_36, %c0_37] : memref<8x1xf32, #tpu.memory_space<vmem>>, vector<8x1xf32>
    tpu.vector_store %arg9[%c0_36, %c0_37], %56 {strides = array<i32>} : memref<8x1xf32, #tpu.memory_space<vmem>>, vector<8x1xf32>,
    %c0_i32_38 = arith.constant 0 : i32
    %75 = arith.cmpi eq, %arg1, %c0_i32_38 : i32
    %76 = arith.extui %75 : i1 to i32
    %c0_i32_39 = arith.constant 0 : i32
    %77 = arith.cmpi ne, %76, %c0_i32_39 : i32
    scf.if %77 {
      %c0_40 = arith.constant 0 : index
      %c0_41 = arith.constant 0 : index
      %78 = vector.load %arg7[%c0_40, %c0_41] : memref<8x1xf32, #tpu.memory_space<vmem>>, vector<8x1xf32>
      %c0_42 = arith.constant 0 : index
      %c0_43 = arith.constant 0 : index
      %79 = vector.load %arg8[%c0_42, %c0_43] : memref<8x1xf32, #tpu.memory_space<vmem>>, vector<8x1xf32>
      %80 = math.log %79 : vector<8x1xf32>
      %81 = arith.addf %78, %80 : vector<8x1xf32>
      %c0_44 = arith.constant 0 : index
      %c0_45 = arith.constant 0 : index
      %82 = vector.load %arg6[%c0_44, %c0_45] : memref<8x2xf32, #tpu.memory_space<vmem>>, vector<8x1xf32>
      tpu.vector_store %arg6[%c0_44, %c0_45], %81 {strides = array<i32>} : memref<8x2xf32, #tpu.memory_space<vmem>>, vector<8x1xf32>,
      %c0_46 = arith.constant 0 : index
      %c0_47 = arith.constant 0 : index
      %83 = vector.load %arg9[%c0_46, %c0_47] : memref<8x1xf32, #tpu.memory_space<vmem>>, vector<8x1xf32>
      %c0_48 = arith.constant 0 : index
      %c0_49 = arith.constant 0 : index
      %84 = vector.load %arg10[%c0_48, %c0_49] : memref<8x1xf32, #tpu.memory_space<vmem>>, vector<8x1xf32>
      %85 = math.log %84 : vector<8x1xf32>
      %86 = arith.addf %83, %85 : vector<8x1xf32>
      %c0_50 = arith.constant 0 : index
      %c1 = arith.constant 1 : index
      %87 = vector.load %arg6[%c0_50, %c1] : memref<8x2xf32, #tpu.memory_space<vmem>>, vector<8x1xf32>
      tpu.vector_store %arg6[%c0_50, %c1], %86 {strides = array<i32>} : memref<8x2xf32, #tpu.memory_space<vmem>>, vector<8x1xf32>,
    } else {
    }
    return
  }
  func.func @transform_0(%arg0: i32, %arg1: i32) -> (i32, i32) {
    %c0_i32 = arith.constant 0 : i32
    %c0_i32_0 = arith.constant 0 : i32
    return %arg0, %c0_i32 : i32, i32
  }
  func.func @transform_1(%arg0: i32, %arg1: i32) -> (i32, i32) {
    %c0_i32 = arith.constant 0 : i32
    %c0_i32_0 = arith.constant 0 : i32
    return %arg0, %c0_i32 : i32, i32
  }
  func.func @transform_2(%arg0: i32, %arg1: i32) -> (i32, i32) {
    %c0_i32 = arith.constant 0 : i32
    %c0_i32_0 = arith.constant 0 : i32
    return %arg1, %c0_i32 : i32, i32
  }
  func.func @transform_3(%arg0: i32, %arg1: i32) -> (i32, i32) {
    %c0_i32 = arith.constant 0 : i32
    %c0_i32_0 = arith.constant 0 : i32
    return %arg1, %c0_i32 : i32, i32
  }
  func.func @transform_4(%arg0: i32, %arg1: i32) -> (i32, i32) {
    %c0_i32 = arith.constant 0 : i32
    %c0_i32_0 = arith.constant 0 : i32
    return %arg0, %c0_i32 : i32, i32
  }
}

</mosaic_0001>

<llo_original>
// kernel: nce_softmax_loss.1
$region0: #{nce_softmax_loss.1}
  #allocation0 [shape = 'u32[]', space=smem, size = 0x4, offset = 0x4, fixed_abs, tag = 'smem constant byte address 0x4 - core index']
  #allocation1 [shape = 'u32[72,128]{1,0:T(1,128)}', space=vmem, size = 0x9000, scoped, tag = 'internal scratch']
  #allocation2 [shape = 'f32[8,1]{1,0:T(8,128)}', space=vmem, size = 0x1000, scoped, tag = 'scratch operand']
  #allocation3 [shape = 'f32[8,1]{1,0:T(8,128)}', space=vmem, size = 0x1000, scoped, tag = 'scratch operand']
  #allocation4 [shape = 'f32[8,1]{1,0:T(8,128)}', space=vmem, size = 0x1000, scoped, tag = 'scratch operand']
  #allocation5 [shape = 'f32[8,1]{1,0:T(8,128)}', space=vmem, size = 0x1000, scoped, tag = 'scratch operand']
  %s0 = inlined_call_operand.vmem [shape: bf16[8,128], index: 0, kind: input, shape index: {}, may-alias: {0,2}]
  %s1 = inlined_call_operand.vmem [shape: bf16[8,128], index: 1, kind: input, shape index: {}, may-alias: {1,3}]
  %s2 = inlined_call_operand.vmem [shape: bf16[8,128], index: 2, kind: input, shape index: {}, may-alias: {0,2}]
  %s3 = inlined_call_operand.vmem [shape: bf16[8,128], index: 3, kind: input, shape index: {}, may-alias: {1,3}]
  %s4 = inlined_call_operand.vmem [shape: f32[8,2], index: 4, kind: output, shape index: {}]
  %s5 = sld [smem:[#allocation0]]
  $region34: #{nce_softmax_loss.1} parent=0
    _
  %s7 = ssub.s32 1, %s5
  %s8 = scalar_select 0, %s7, %s5
  // Predicated region
  $region2: #{nce_softmax_loss.1} parent=0 // pred_check
    _
  $region3: #{nce_softmax_loss.1} parent=0 // pred_check_branch
    %10 = sbr.rel (0) target = $region5
  $region4: #{nce_softmax_loss.1} parent=0 // pred_region
    _
  $region5: #{nce_softmax_loss.1} parent=0 // pred_fallthru
    _
  // Predicated region
  $region6: #{nce_softmax_loss.1} parent=0 // pred_check
    _
  $region7: #{nce_softmax_loss.1} parent=0 // pred_check_branch
    %12 = sbr.rel (0) target = $region9
  $region8: #{nce_softmax_loss.1} parent=0 // pred_region
    _
  $region9: #{nce_softmax_loss.1} parent=0 // pred_fallthru
    _
  // Predicated region
  $region10: #{nce_softmax_loss.1} parent=0 // pred_check
    _
  $region11: #{nce_softmax_loss.1} parent=0 // pred_check_branch
    %14 = sbr.rel (0) target = $region13
  $region12: #{nce_softmax_loss.1} parent=0 // pred_region
    _
  $region13: #{nce_softmax_loss.1} parent=0 // pred_fallthru
    _
  // Predicated region
  $region14: #{nce_softmax_loss.1} parent=0 // pred_check
    _
  $region15: #{nce_softmax_loss.1} parent=0 // pred_check_branch
    %16 = sbr.rel (0) target = $region17
  $region16: #{nce_softmax_loss.1} parent=0 // pred_region
    _
  $region17: #{nce_softmax_loss.1} parent=0 // pred_fallthru
    _
  %p18 = scmp.eq.s32.totalorder 0, 0
  // Predicated region
  $region18: #{nce_softmax_loss.1} parent=0 // pred_check
    %p19 = pneg %p18
  $region19: #{nce_softmax_loss.1} parent=0 // pred_check_branch
    %21 = sbr.rel (%p19) target = $region21
  $region20: #{nce_softmax_loss.1} parent=0 // pred_region
    %vm22 = vcmask 7168
    %23 = vst.msk [vmem:[#allocation2] sm:$0xff] %vm22, -inf
    %24 = vst.msk [vmem:[#allocation4] sm:$0xff] %vm22, -inf
    %25 = vst.msk [vmem:[#allocation3] sm:$0xff] %vm22, 0.0
    %26 = vst.msk [vmem:[#allocation5] sm:$0xff] %vm22, 0.0
  $region21: #{nce_softmax_loss.1} parent=0 // pred_fallthru
    _
  %v27 = vld [vmem:[%s0] sm:$0xf]
  %v28 = vld [vmem:[%s1] sm:$0xf]
  %v29 = vld [vmem:[%s2] sm:$0xf]
  %v30 = vld [vmem:[%s3] sm:$0xf]
  %s31 = smul.u32 0, 8
  %v32 = vlaneseq
  %v33 = vshrl.u32 %v32, 7
  %v34 = vstv %s31
  %v35 = vadd.s32 %v34, %v33
  %s36 = smul.u32 0, 8
  %v37 = vlaneseq
  %v38 = vand.u32 %v37, 127
  %v39 = vstv %s36
  %v40 = vadd.s32 %v39, %v38
  %vm41 = vcmp.eq.s32.totalorder %v35, %v40
  %v42 = vsel %vm41, 1.25e+13, 0.0
  %43 = vmatpush.bf16.xpose.msra.mxu0 0
  %44 = vmatpush.bf16.xpose.msra.mxu0 0
  %45 = vmatpush.bf16.xpose.msra.mxu0 0
  %46 = vmatpush.bf16.xpose.msra.mxu0 0
  %47 = vmatpush.bf16.xpose.msra.mxu0 0
  %48 = vmatpush.bf16.xpose.msra.mxu0 0
  %49 = vmatpush.bf16.xpose.msra.mxu0 0
  %50 = vmatpush.bf16.xpose.msra.mxu0 %v29
  %51 = vmatmul.bf16.gmra.mxu0 %v27
  %v52 = vpop.f32.mrf.mxu0
  %v53 = vadd.f32 0.0, %v52
  %v54 = vpop.f32.mrf.mxu0
  %55 = vdwg.mxu0
  %v56 = vsub.f32 %v53, %v42
  %57 = vmatpush.bf16.xpose.msra.mxu0 0
  %58 = vmatpush.bf16.xpose.msra.mxu0 0
  %59 = vmatpush.bf16.xpose.msra.mxu0 0
  %60 = vmatpush.bf16.xpose.msra.mxu0 0
  %61 = vmatpush.bf16.xpose.msra.mxu0 0
  %62 = vmatpush.bf16.xpose.msra.mxu0 0
  %63 = vmatpush.bf16.xpose.msra.mxu0 0
  %64 = vmatpush.bf16.xpose.msra.mxu0 %v30
  %65 = vmatmul.bf16.gmra.mxu0 %v27
  %v66 = vpop.f32.mrf.mxu0
  %v67 = vadd.f32 0.0, %v66
  %v68 = vpop.f32.mrf.mxu0
  %69 = vdwg.mxu0
  %v70 = vld [vmem:[#allocation2] sm:$0xff]
  %vm71 = vcmask 64512
  %v72 = vsel %vm71, %v56, -inf
  %73 = vmax.xlane.f32.xlu0 %v72
  %v74 = vpop.xlane.xlu0 %73
  %v75 = vsel %vm71, %v67, -inf
  %76 = vmax.xlane.f32.xlu0 %v75
  %v77 = vpop.xlane.xlu0 %76
  %v78 = vmax.f32 %v74, %v77
  %v79 = vmax.f32 %v70, %v78
  %v80 = vsub.f32 %v70, %v79
  %v81 = vmul.f32 %v80, 1.442695
  %v82 = vpow.pop %v81
  %84 = vset.pattern.permute.xlu0 0
  %85 = vperm.xlu0 %84, %v79
  %v86 = vpop.permute.xlu0 %85
  %v88 = vsub.f32 %v56, %v86
  %v89 = vmul.f32 %v88, 1.442695
  %v90 = vpow.pop %v89
  %v91 = vsel %vm71, %v90, 0.0
  %92 = vadd.xlane.f32.xlu0 %v91
  %v93 = vpop.xlane.xlu0 %92
  %v94 = vsub.f32 %v67, %v86
  %v95 = vmul.f32 %v94, 1.442695
  %v96 = vpow.pop %v95
  %v97 = vsel %vm71, %v96, 0.0
  %98 = vadd.xlane.f32.xlu0 %v97
  %v99 = vpop.xlane.xlu0 %98
  %v100 = vadd.f32 %v93, %v99
  %v101 = vld [vmem:[#allocation3] sm:$0xff]
  %v102 = vmul.f32 %v82, %v101
  %v103 = vadd.f32 %v102, %v100
  %vm104 = vcmask 7168
  %105 = vst.msk [vmem:[#allocation3] sm:$0xff] %vm104, %v103
  %106 = vst.msk [vmem:[#allocation2] sm:$0xff] %vm104, %v79
  %107 = vmatpush.bf16.xpose.msra.mxu0 0
  %108 = vmatpush.bf16.xpose.msra.mxu0 0
  %109 = vmatpush.bf16.xpose.msra.mxu0 0
  %110 = vmatpush.bf16.xpose.msra.mxu0 0
  %111 = vmatpush.bf16.xpose.msra.mxu0 0
  %112 = vmatpush.bf16.xpose.msra.mxu0 0
  %113 = vmatpush.bf16.xpose.msra.mxu0 0
  %114 = vmatpush.bf16.xpose.msra.mxu0 %v29
  %115 = vmatmul.bf16.gmra.mxu0 %v28
  %v116 = vpop.f32.mrf.mxu0
  %v117 = vadd.f32 0.0, %v116
  %v118 = vpop.f32.mrf.mxu0
  %119 = vdwg.mxu0
  %120 = vmatpush.bf16.xpose.msra.mxu0 0
  %121 = vmatpush.bf16.xpose.msra.mxu0 0
  %122 = vmatpush.bf16.xpose.msra.mxu0 0
  %123 = vmatpush.bf16.xpose.msra.mxu0 0
  %124 = vmatpush.bf16.xpose.msra.mxu0 0
  %125 = vmatpush.bf16.xpose.msra.mxu0 0
  %126 = vmatpush.bf16.xpose.msra.mxu0 0
  %127 = vmatpush.bf16.xpose.msra.mxu0 %v30
  %128 = vmatmul.bf16.gmra.mxu0 %v28
  %v129 = vpop.f32.mrf.mxu0
  %v130 = vadd.f32 0.0, %v129
  %v131 = vpop.f32.mrf.mxu0
  %132 = vdwg.mxu0
  %v133 = vsub.f32 %v130, %v42
  %v134 = vld [vmem:[#allocation4] sm:$0xff]
  %v135 = vsel %vm71, %v117, -inf
  %136 = vmax.xlane.f32.xlu0 %v135
  %v137 = vpop.xlane.xlu0 %136
  %v138 = vsel %vm71, %v133, -inf
  %139 = vmax.xlane.f32.xlu0 %v138
  %v140 = vpop.xlane.xlu0 %139
  %v141 = vmax.f32 %v137, %v140
  %v142 = vmax.f32 %v134, %v141
  %v143 = vsub.f32 %v134, %v142
  %v144 = vmul.f32 %v143, 1.442695
  %v145 = vpow.pop %v144
  %147 = vset.pattern.permute.xlu0 0
  %148 = vperm.xlu0 %147, %v142
  %v149 = vpop.permute.xlu0 %148
  %v151 = vsub.f32 %v117, %v149
  %v152 = vmul.f32 %v151, 1.442695
  %v153 = vpow.pop %v152
  %v154 = vsel %vm71, %v153, 0.0
  %155 = vadd.xlane.f32.xlu0 %v154
  %v156 = vpop.xlane.xlu0 %155
  %v157 = vsub.f32 %v133, %v149
  %v158 = vmul.f32 %v157, 1.442695
  %v159 = vpow.pop %v158
  %v160 = vsel %vm71, %v159, 0.0
  %161 = vadd.xlane.f32.xlu0 %v160
  %v162 = vpop.xlane.xlu0 %161
  %v163 = vadd.f32 %v156, %v162
  %v164 = vld [vmem:[#allocation5] sm:$0xff]
  %v165 = vmul.f32 %v145, %v164
  %v166 = vadd.f32 %v165, %v163
  %167 = vst.msk [vmem:[#allocation5] sm:$0xff] %vm104, %v166
  %168 = vst.msk [vmem:[#allocation4] sm:$0xff] %vm104, %v142
  // Predicated region
  $region22: #{nce_softmax_loss.1} parent=0 // pred_check
    %p169 = pneg %p18
  $region23: #{nce_softmax_loss.1} parent=0 // pred_check_branch
    %171 = sbr.rel (%p169) target = $region25
  $region24: #{nce_softmax_loss.1} parent=0 // pred_region
    %v172 = vld [vmem:[#allocation2] sm:$0xff]
    %v173 = vld [vmem:[#allocation3] sm:$0xff]
    %v174 = vlog2.pop %v173
    %v175 = vmul.f32 %v174, 0.6931472
    %v176 = vadd.f32 %v172, %v175
    %177 = vst.msk [vmem:[%s4] sm:$0xff] %vm104, %v176
    %v178 = vld [vmem:[#allocation4] sm:$0xff]
    %v179 = vld [vmem:[#allocation5] sm:$0xff]
    %v180 = vlog2.pop %v179
    %v181 = vmul.f32 %v180, 0.6931472
    %v182 = vadd.f32 %v178, %v181
    %184 = vrot.lane.b32.xlu0 %v182, 1
    %v185 = vpop.permute.xlu0 %184
    %vm187 = vcmask 15368
    %188 = vst.msk [vmem:[%s4] sm:$0xff] %vm187, %v185
  $region25: #{nce_softmax_loss.1} parent=0 // pred_fallthru
    _
  // Predicated region
  $region26: #{nce_softmax_loss.1} parent=0 // pred_check
    _
  $region27: #{nce_softmax_loss.1} parent=0 // pred_check_branch
    %190 = sbr.rel (0) target = $region29
  $region28: #{nce_softmax_loss.1} parent=0 // pred_region
    _
  $region29: #{nce_softmax_loss.1} parent=0 // pred_fallthru
    _
  // Predicated region
  $region30: #{nce_softmax_loss.1} parent=0 // pred_check
    _
  $region31: #{nce_softmax_loss.1} parent=0 // pred_check_branch
    %192 = sbr.rel (0) target = $region33
  $region32: #{nce_softmax_loss.1} parent=0 // pred_region
    _
  $region33: #{nce_softmax_loss.1} parent=0 // pred_fallthru
    _

</llo_original>
